<compile_context>
chip_gen: v6e
topology: v6e:2x2x1
jax: 0.10.0
libtpu: 0.0.40
codegen_flags: <defaults>
</compile_context>

<pallas_src>
import functools

import jax
import jax.numpy as jnp
from jax import lax
from jax.experimental import pallas as pl
from jax.experimental.pallas import tpu as pltpu

EPS = 1e-5  # PyTorch GroupNorm default eps


def _act_mid(name, x):
    """Activation used between the two convs (mirrors get_activation_function)."""
    if name == 'relu':
        return jnp.maximum(x, 0.0)
    elif name == 'relu6':
        return jnp.clip(x, 0.0, 6.0)
    elif name == 'silu':
        return x * jax.nn.sigmoid(x)
    elif name == 'lrelu':
        return jnp.where(x >= 0, x, 0.1 * x)       # nn.LeakyReLU(0.1)
    elif name == 'gelu':
        return jax.nn.gelu(x, approximate=False)    # nn.GELU() is exact (erf)
    else:
        return x * jax.nn.sigmoid(x)


def _act_res(name, x):
    """Activation applied to the residual output (mirrors F.* defaults)."""
    if name == 'relu':
        return jnp.maximum(x, 0.0)
    elif name == 'relu6':
        return jnp.clip(x, 0.0, 6.0)
    elif name == 'silu':
        return x * jax.nn.sigmoid(x)
    elif name == 'lrelu':
        return jnp.where(x >= 0, x, 0.01 * x)       # F.leaky_relu default slope
    elif name == 'gelu':
        return jax.nn.gelu(x, approximate=False)
    else:
        return x * jax.nn.sigmoid(x)


def _double_conv_kernel(x_ref, m_ref, w1_ref, g1_ref, b1_ref, w2_ref, g2_ref, b2_ref,
                        o_ref, *, H, W, c_mid, c_out, residual, act, mm_dtype):
    """One batch element per grid step. Data layout: (channels, H*W)."""
    HW = H * W
    x = x_ref[0].astype(jnp.float32)    # (Cin_p, HW)   lanes = HW
    mk = m_ref[...]                     # (9, HW) f32 {0,1} border-validity masks

    def taps(h):
        """Build the im2col patch matrix (9*C, HW) for a 3x3/pad=1 conv.

        Shifts along the flattened spatial axis are lane rotations (XLU);
        wrap-around / out-of-image positions are zeroed via the precomputed
        masks (VPU multiply).  All pieces are 8k sublanes -> aligned concat,
        and the whole conv collapses to a single MXU matmul with K = 9*C.
        """
        pieces = []
        t = 0
        for dy in (-1, 0, 1):
            for dx in (-1, 0, 1):
                s = dy * W + dx
                if s == 0:
                    pieces.append(h)
                else:
                    rolled = pltpu.roll(h, (-s) % HW, 1)   # out[p] = h[p + s]
                    pieces.append(rolled * mk[t:t + 1, :])
                t += 1
        return jnp.concatenate(pieces, axis=0).astype(mm_dtype)   # (9*C, HW)

    def group_norm(acc, g_ref, b_ref, c_real):
        """GroupNorm(num_groups=1): single-pass stats + fused scale/shift.

        Padded channel rows contribute zero to the sums and the divisor uses the
        real channel count, so padding never perturbs the statistics.
        """
        inv_n = 1.0 / float(c_real * HW)
        mean = jnp.sum(acc) * inv_n
        mean_sq = jnp.sum(acc * acc) * inv_n
        var = mean_sq - mean * mean
        rstd = lax.rsqrt(var + EPS)                # EUP op, off the VALU critical path
        scale = g_ref[...] * rstd                  # (C, 1) per-channel
        shift = b_ref[...] - mean * scale          # (C, 1)
        return acc * scale + shift

    # ---- conv1: 3x3, padding=1, bias=False  (single MXU matmul, K = 9*Cin) ----
    acc1 = jnp.dot(w1_ref[...], taps(x), preferred_element_type=jnp.float32)  # (Cmid_p, HW)
    y1 = _act_mid(act, group_norm(acc1, g1_ref, b1_ref, c_mid))

    # ---- conv2: 3x3, padding=1, bias=False ----
    acc2 = jnp.dot(w2_ref[...], taps(y1), preferred_element_type=jnp.float32)  # (Cout_p, HW)
    y2 = group_norm(acc2, g2_ref, b2_ref, c_out)

    if residual:
        y2 = _act_res(act, x + y2)   # Cin_p == Cout_p (checked in wrapper)

    o_ref[0] = y2.astype(o_ref.dtype)   # lane-dense store: last dim = HW


def _round_up(c, m=8):
    return -(-c // m) * m


def double_conv(x_nchw, w1, g1, b1, w2, g2, b2, *, residual=False, act='silu',
                mm_dtype=jnp.bfloat16):
    """Pallas DoubleConv.

    x_nchw: (N, Cin, H, W); w1: (Cmid, Cin, 3, 3); w2: (Cout, Cmid, 3, 3);
    g1/b1: (Cmid,); g2/b2: (Cout,).  Returns (N, Cout, H, W).
    """
    N, Cin, H, W = x_nchw.shape
    Cmid = w1.shape[0]
    Cout = w2.shape[0]
    assert w1.shape[1] == Cin and w2.shape[1] == Cmid
    if residual:
        assert Cin == Cout, "residual DoubleConv requires in_channels == out_channels"

    HW = H * W
    Cin_p, Cmid_p, Cout_p = _round_up(Cin), _round_up(Cmid), _round_up(Cout)

    # ---- glue: free reshape to (N, C, H*W) + zero-pad channels to multiple of 8 ----
    x_flat = x_nchw.reshape(N, Cin, HW)
    if Cin_p != Cin:
        x_flat = jnp.pad(x_flat, ((0, 0), (0, Cin_p - Cin), (0, 0)))

    # ---- precomputed {0,1} border masks for the 9 taps (grid-invariant, tiny) ----
    ys = jnp.arange(H, dtype=jnp.int32).reshape(H, 1)
    xs = jnp.arange(W, dtype=jnp.int32).reshape(1, W)
    mask_rows = []
    for dy in (-1, 0, 1):
        for dx in (-1, 0, 1):
            ok = ((ys + dy >= 0) & (ys + dy < H) & (xs + dx >= 0) & (xs + dx < W))
            mask_rows.append(ok.reshape(1, HW))
    mask9 = jnp.concatenate(mask_rows, axis=0).astype(jnp.float32)   # (9, HW)

    # ---- repack conv weights to (Cout_p, 9*Cin_p), tap-major/cin-minor, bf16 ----
    def pack_w(w, cin, cin_p, cout, cout_p):
        wt = jnp.transpose(w, (0, 2, 3, 1))                     # (cout, 3, 3, cin)
        if cin_p != cin:
            wt = jnp.pad(wt, ((0, 0), (0, 0), (0, 0), (0, cin_p - cin)))
        wt = wt.reshape(cout, 9 * cin_p)
        if cout_p != cout:
            wt = jnp.pad(wt, ((0, cout_p - cout), (0, 0)))
        return wt.astype(mm_dtype)

    w1f = pack_w(w1, Cin, Cin_p, Cmid, Cmid_p)
    w2f = pack_w(w2, Cmid, Cmid_p, Cout, Cout_p)

    def pack_affine(v, c, c_p):
        v = v.astype(jnp.float32)
        if c_p != c:
            v = jnp.pad(v, (0, c_p - c))
        return v.reshape(c_p, 1)

    g1r, b1r = pack_affine(g1, Cmid, Cmid_p), pack_affine(b1, Cmid, Cmid_p)
    g2r, b2r = pack_affine(g2, Cout, Cout_p), pack_affine(b2, Cout, Cout_p)

    kernel = functools.partial(_double_conv_kernel, H=H, W=W, c_mid=Cmid, c_out=Cout,
                               residual=residual, act=act, mm_dtype=mm_dtype)

    out_flat = pl.pallas_call(
        kernel,
        out_shape=jax.ShapeDtypeStruct((N, Cout_p, HW), x_nchw.dtype),
        grid_spec=pltpu.PrefetchScalarGridSpec(
            num_scalar_prefetch=0,
            grid=(N,),
            in_specs=[
                pl.BlockSpec((1, Cin_p, HW), lambda n: (n, 0, 0)),       # x
                pl.BlockSpec((9, HW), lambda n: (0, 0)),                  # border masks
                pl.BlockSpec((Cmid_p, 9 * Cin_p), lambda n: (0, 0)),      # w1
                pl.BlockSpec((Cmid_p, 1), lambda n: (0, 0)),              # g1
                pl.BlockSpec((Cmid_p, 1), lambda n: (0, 0)),              # b1
                pl.BlockSpec((Cout_p, 9 * Cmid_p), lambda n: (0, 0)),     # w2
                pl.BlockSpec((Cout_p, 1), lambda n: (0, 0)),              # g2
                pl.BlockSpec((Cout_p, 1), lambda n: (0, 0)),              # b2
            ],
            out_specs=pl.BlockSpec((1, Cout_p, HW), lambda n: (n, 0, 0)),
        ),
        compiler_params=pltpu.CompilerParams(dimension_semantics=("parallel",)),
    )(x_flat, mask9, w1f, g1r, b1r, w2f, g2r, b2r)

    if Cout_p != Cout:
        out_flat = out_flat[:, :Cout, :]
    return out_flat.reshape(N, Cout, H, W)


# ---------------- pure-JAX reference (for correctness check only) ----------------
def _ref_double_conv(x, w1, g1, b1, w2, g2, b2, *, residual, act):
    def conv(h, w):
        return lax.conv_general_dilated(
            h, w, window_strides=(1, 1), padding=((1, 1), (1, 1)),
            dimension_numbers=('NCHW', 'OIHW', 'NCHW'))

    def gn(h, g, b):
        mean = jnp.mean(h, axis=(1, 2, 3), keepdims=True)
        var = jnp.mean((h - mean) ** 2, axis=(1, 2, 3), keepdims=True)
        hn = (h - mean) * lax.rsqrt(var + EPS)
        return hn * g.reshape(1, -1, 1, 1) + b.reshape(1, -1, 1, 1)

    h = _act_mid(act, gn(conv(x, w1), g1, b1))
    h = gn(conv(h, w2), g2, b2)
    if residual:
        h = _act_res(act, x + h)
    return h


if __name__ == "__main__":
    key = jax.random.PRNGKey(0)
    N, H, W = 2, 16, 16

    # ----- case 1: non-residual DoubleConv(in=4, out=8), default mid=out -----
    Cin, Cmid, Cout = 4, 8, 8
    k = jax.random.split(key, 8)
    x = jax.random.normal(k[0], (N, Cin, H, W), jnp.float32)
    w1 = jax.random.normal(k[1], (Cmid, Cin, 3, 3), jnp.float32) * 0.2
    w2 = jax.random.normal(k[2], (Cout, Cmid, 3, 3), jnp.float32) * 0.2
    g1 = 1.0 + 0.1 * jax.random.normal(k[3], (Cmid,), jnp.float32)
    b1 = 0.1 * jax.random.normal(k[4], (Cmid,), jnp.float32)
    g2 = 1.0 + 0.1 * jax.random.normal(k[5], (Cout,), jnp.float32)
    b2 = 0.1 * jax.random.normal(k[6], (Cout,), jnp.float32)

    out = double_conv(x, w1, g1, b1, w2, g2, b2, residual=False, act='silu')
    jax.block_until_ready(out)
    ref = _ref_double_conv(x, w1, g1, b1, w2, g2, b2, residual=False, act='silu')
    assert out.shape == (N, Cout, H, W)
    # tolerance leaves room for bf16 MXU operands (accumulation is f32)
    assert jnp.allclose(out, ref, rtol=2e-2, atol=2e-2), "non-residual mismatch"

    # ----- case 2: residual DoubleConv(in=8, out=8, residual=True) -----
    Cin2 = Cout2 = Cmid2 = 8
    kk = jax.random.split(k[7], 8)
    x2 = jax.random.normal(kk[0], (N, Cin2, H, W), jnp.float32)
    w1r = jax.random.normal(kk[1], (Cmid2, Cin2, 3, 3), jnp.float32) * 0.2
    w2r = jax.random.normal(kk[2], (Cout2, Cmid2, 3, 3), jnp.float32) * 0.2
    g1r_ = 1.0 + 0.1 * jax.random.normal(kk[3], (Cmid2,), jnp.float32)
    b1r_ = 0.1 * jax.random.normal(kk[4], (Cmid2,), jnp.float32)
    g2r_ = 1.0 + 0.1 * jax.random.normal(kk[5], (Cout2,), jnp.float32)
    b2r_ = 0.1 * jax.random.normal(kk[6], (Cout2,), jnp.float32)

    out2 = double_conv(x2, w1r, g1r_, b1r_, w2r, g2r_, b2r_, residual=True, act='silu')
    jax.block_until_ready(out2)
    ref2 = _ref_double_conv(x2, w1r, g1r_, b1r_, w2r, g2r_, b2r_, residual=True, act='silu')
    assert out2.shape == (N, Cout2, H, W)
    assert jnp.allclose(out2, ref2, rtol=2e-2, atol=2e-2), "residual mismatch"

    print("KERNEL_OK")
</pallas_src>

<mosaic_0001>
module attributes {stable_mosaic.version = 11 : i64} {
  func.func @_double_conv_kernel(%arg0: i32, %arg1: memref<1x8x256xf32, #tpu.memory_space<vmem>>, %arg2: memref<9x256xf32, #tpu.memory_space<vmem>>, %arg3: memref<8x72xbf16, #tpu.memory_space<vmem>>, %arg4: memref<8x1xf32, #tpu.memory_space<vmem>>, %arg5: memref<8x1xf32, #tpu.memory_space<vmem>>, %arg6: memref<8x72xbf16, #tpu.memory_space<vmem>>, %arg7: memref<8x1xf32, #tpu.memory_space<vmem>>, %arg8: memref<8x1xf32, #tpu.memory_space<vmem>>, %arg9: memref<1x8x256xf32, #tpu.memory_space<vmem>>) attributes {dimension_semantics = [#tpu.dimension_semantics<parallel>], iteration_bounds = array<i64: 2>, scalar_prefetch = 0 : i64, scratch_operands = 0 : i64, tpu.core_type = #tpu.core_type<tc>, window_params = [{transform_indices = @transform_0, window_bounds = array<i64: 1, 8, 256>}, {pipeline_mode = #tpu.pipeline_mode<synchronous>, transform_indices = @transform_1, window_bounds = array<i64: 9, 256>}, {pipeline_mode = #tpu.pipeline_mode<synchronous>, transform_indices = @transform_2, window_bounds = array<i64: 8, 72>}, {pipeline_mode = #tpu.pipeline_mode<synchronous>, transform_indices = @transform_3, window_bounds = array<i64: 8, 1>}, {pipeline_mode = #tpu.pipeline_mode<synchronous>, transform_indices = @transform_4, window_bounds = array<i64: 8, 1>}, {pipeline_mode = #tpu.pipeline_mode<synchronous>, transform_indices = @transform_5, window_bounds = array<i64: 8, 72>}, {pipeline_mode = #tpu.pipeline_mode<synchronous>, transform_indices = @transform_6, window_bounds = array<i64: 8, 1>}, {pipeline_mode = #tpu.pipeline_mode<synchronous>, transform_indices = @transform_7, window_bounds = array<i64: 8, 1>}, {transform_indices = @transform_8, window_bounds = array<i64: 1, 8, 256>}]} {
    %c0 = arith.constant 0 : index
    %c0_0 = arith.constant 0 : index
    %c0_1 = arith.constant 0 : index
    %0 = vector.load %arg1[%c0, %c0_0, %c0_1] : memref<1x8x256xf32, #tpu.memory_space<vmem>>, vector<1x8x256xf32>
    %1 = vector.shape_cast %0 : vector<1x8x256xf32> to vector<8x256xf32>
    %c0_2 = arith.constant 0 : index
    %c0_3 = arith.constant 0 : index
    %2 = vector.load %arg2[%c0_2, %c0_3] : memref<9x256xf32, #tpu.memory_space<vmem>>, vector<9x256xf32>
    %c0_4 = arith.constant 0 : index
    %c0_5 = arith.constant 0 : index
    %3 = vector.load %arg3[%c0_4, %c0_5] : memref<8x72xbf16, #tpu.memory_space<vmem>>, vector<8x72xbf16>
    %c17_i32 = arith.constant 17 : i32
    %4 = tpu.dynamic_rotate %1 by %c17_i32 dim 1 : vector<8x256xf32>, i32 -> vector<8x256xf32>
    %5 = vector.extract_strided_slice %2 {offsets = [0, 0], sizes = [1, 256], strides = [1, 1]} : vector<9x256xf32> to vector<1x256xf32>
    %6 = vector.broadcast %5 : vector<1x256xf32> to vector<8x256xf32>
    %7 = arith.mulf %4, %6 : vector<8x256xf32>
    %c16_i32 = arith.constant 16 : i32
    %8 = tpu.dynamic_rotate %1 by %c16_i32 dim 1 : vector<8x256xf32>, i32 -> vector<8x256xf32>
    %9 = vector.extract_strided_slice %2 {offsets = [1, 0], sizes = [1, 256], strides = [1, 1]} : vector<9x256xf32> to vector<1x256xf32>
    %10 = vector.broadcast %9 : vector<1x256xf32> to vector<8x256xf32>
    %11 = arith.mulf %8, %10 : vector<8x256xf32>
    %c15_i32 = arith.constant 15 : i32
    %12 = tpu.dynamic_rotate %1 by %c15_i32 dim 1 : vector<8x256xf32>, i32 -> vector<8x256xf32>
    %13 = vector.extract_strided_slice %2 {offsets = [2, 0], sizes = [1, 256], strides = [1, 1]} : vector<9x256xf32> to vector<1x256xf32>
    %14 = vector.broadcast %13 : vector<1x256xf32> to vector<8x256xf32>
    %15 = arith.mulf %12, %14 : vector<8x256xf32>
    %c1_i32 = arith.constant 1 : i32
    %16 = tpu.dynamic_rotate %1 by %c1_i32 dim 1 : vector<8x256xf32>, i32 -> vector<8x256xf32>
    %17 = vector.extract_strided_slice %2 {offsets = [3, 0], sizes = [1, 256], strides = [1, 1]} : vector<9x256xf32> to vector<1x256xf32>
    %18 = vector.broadcast %17 : vector<1x256xf32> to vector<8x256xf32>
    %19 = arith.mulf %16, %18 : vector<8x256xf32>
    %c255_i32 = arith.constant 255 : i32
    %20 = tpu.dynamic_rotate %1 by %c255_i32 dim 1 : vector<8x256xf32>, i32 -> vector<8x256xf32>
    %21 = vector.extract_strided_slice %2 {offsets = [5, 0], sizes = [1, 256], strides = [1, 1]} : vector<9x256xf32> to vector<1x256xf32>
    %22 = vector.broadcast %21 : vector<1x256xf32> to vector<8x256xf32>
    %23 = arith.mulf %20, %22 : vector<8x256xf32>
    %c241_i32 = arith.constant 241 : i32
    %24 = tpu.dynamic_rotate %1 by %c241_i32 dim 1 : vector<8x256xf32>, i32 -> vector<8x256xf32>
    %25 = vector.extract_strided_slice %2 {offsets = [6, 0], sizes = [1, 256], strides = [1, 1]} : vector<9x256xf32> to vector<1x256xf32>
    %26 = vector.broadcast %25 : vector<1x256xf32> to vector<8x256xf32>
    %27 = arith.mulf %24, %26 : vector<8x256xf32>
    %c240_i32 = arith.constant 240 : i32
    %28 = tpu.dynamic_rotate %1 by %c240_i32 dim 1 : vector<8x256xf32>, i32 -> vector<8x256xf32>
    %29 = vector.extract_strided_slice %2 {offsets = [7, 0], sizes = [1, 256], strides = [1, 1]} : vector<9x256xf32> to vector<1x256xf32>
    %30 = vector.broadcast %29 : vector<1x256xf32> to vector<8x256xf32>
    %31 = arith.mulf %28, %30 : vector<8x256xf32>
    %c239_i32 = arith.constant 239 : i32
    %32 = tpu.dynamic_rotate %1 by %c239_i32 dim 1 : vector<8x256xf32>, i32 -> vector<8x256xf32>
    %33 = vector.extract_strided_slice %2 {offsets = [8, 0], sizes = [1, 256], strides = [1, 1]} : vector<9x256xf32> to vector<1x256xf32>
    %34 = vector.broadcast %33 : vector<1x256xf32> to vector<8x256xf32>
    %35 = arith.mulf %32, %34 : vector<8x256xf32>
    %36 = tpu.concatenate %7, %11, %15, %19, %1, %23, %27, %31, %35 in 0 : vector<8x256xf32>, vector<8x256xf32>, vector<8x256xf32>, vector<8x256xf32>, vector<8x256xf32>, vector<8x256xf32>, vector<8x256xf32>, vector<8x256xf32>, vector<8x256xf32> -> vector<72x256xf32>
    %37 = arith.truncf %36 : vector<72x256xf32> to vector<72x256xbf16>
    %cst = arith.constant dense<0.000000e+00> : vector<8x256xf32>
    %38 = tpu.matmul %3, %37, %cst {dimension_numbers = #tpu.dot_dimension_numbers<[1], [0], [0], [1], [0, 0, 1, 1], [], []>} : vector<8x72xbf16>, vector<72x256xbf16>, vector<8x256xf32> -> vector<8x256xf32>
    %39 = vector.shape_cast %38 : vector<8x256xf32> to vector<1x8x256xf32>
    %cst_6 = arith.constant dense<0.000000e+00> : vector<1xf32>
    %40 = vector.multi_reduction <add>, %39, %cst_6 [1, 2] : vector<1x8x256xf32> to vector<1xf32>
    %41 = vector.shape_cast %40 : vector<1xf32> to vector<1x1x1xf32>
    %42 = vector.extract %41[0, 0, 0] : f32 from vector<1x1x1xf32>
    %cst_7 = arith.constant 4.8828125E-4 : f32
    %43 = arith.mulf %42, %cst_7 : f32
    %44 = arith.mulf %38, %38 : vector<8x256xf32>
    %45 = vector.shape_cast %44 : vector<8x256xf32> to vector<1x8x256xf32>
    %cst_8 = arith.constant dense<0.000000e+00> : vector<1xf32>
    %46 = vector.multi_reduction <add>, %45, %cst_8 [1, 2] : vector<1x8x256xf32> to vector<1xf32>
    %47 = vector.shape_cast %46 : vector<1xf32> to vector<1x1x1xf32>
    %48 = vector.extract %47[0, 0, 0] : f32 from vector<1x1x1xf32>
    %cst_9 = arith.constant 4.8828125E-4 : f32
    %49 = arith.mulf %48, %cst_9 : f32
    %50 = arith.mulf %43, %43 : f32
    %51 = arith.subf %49, %50 : f32
    %cst_10 = arith.constant 9.99999974E-6 : f32
    %52 = arith.addf %51, %cst_10 : f32
    %53 = math.rsqrt %52 : f32
    %c0_11 = arith.constant 0 : index
    %c0_12 = arith.constant 0 : index
    %54 = vector.load %arg4[%c0_11, %c0_12] : memref<8x1xf32, #tpu.memory_space<vmem>>, vector<8x1xf32>
    %55 = vector.broadcast %53 : f32 to vector<8x1xf32>
    %56 = arith.mulf %54, %55 : vector<8x1xf32>
    %c0_13 = arith.constant 0 : index
    %c0_14 = arith.constant 0 : index
    %57 = vector.load %arg5[%c0_13, %c0_14] : memref<8x1xf32, #tpu.memory_space<vmem>>, vector<8x1xf32>
    %58 = vector.broadcast %43 : f32 to vector<8x1xf32>
    %59 = arith.mulf %58, %56 : vector<8x1xf32>
    %60 = arith.subf %57, %59 : vector<8x1xf32>
    %61 = vector.broadcast %56 : vector<8x1xf32> to vector<8x256xf32>
    %62 = arith.mulf %38, %61 : vector<8x256xf32>
    %63 = vector.broadcast %60 : vector<8x1xf32> to vector<8x256xf32>
    %64 = arith.addf %62, %63 : vector<8x256xf32>
    %65 = arith.negf %64 : vector<8x256xf32>
    %66 = math.exp %65 : vector<8x256xf32>
    %cst_15 = arith.constant 1.000000e+00 : f32
    %67 = vector.broadcast %cst_15 : f32 to vector<8x256xf32>
    %68 = arith.addf %67, %66 : vector<8x256xf32>
    %69 = arith.divf %67, %68 : vector<8x256xf32>
    %70 = arith.mulf %64, %69 : vector<8x256xf32>
    %c0_16 = arith.constant 0 : index
    %c0_17 = arith.constant 0 : index
    %71 = vector.load %arg6[%c0_16, %c0_17] : memref<8x72xbf16, #tpu.memory_space<vmem>>, vector<8x72xbf16>
    %c17_i32_18 = arith.constant 17 : i32
    %72 = tpu.dynamic_rotate %70 by %c17_i32_18 dim 1 : vector<8x256xf32>, i32 -> vector<8x256xf32>
    %73 = vector.extract_strided_slice %2 {offsets = [0, 0], sizes = [1, 256], strides = [1, 1]} : vector<9x256xf32> to vector<1x256xf32>
    %74 = vector.broadcast %73 : vector<1x256xf32> to vector<8x256xf32>
    %75 = arith.mulf %72, %74 : vector<8x256xf32>
    %c16_i32_19 = arith.constant 16 : i32
    %76 = tpu.dynamic_rotate %70 by %c16_i32_19 dim 1 : vector<8x256xf32>, i32 -> vector<8x256xf32>
    %77 = vector.extract_strided_slice %2 {offsets = [1, 0], sizes = [1, 256], strides = [1, 1]} : vector<9x256xf32> to vector<1x256xf32>
    %78 = vector.broadcast %77 : vector<1x256xf32> to vector<8x256xf32>
    %79 = arith.mulf %76, %78 : vector<8x256xf32>
    %c15_i32_20 = arith.constant 15 : i32
    %80 = tpu.dynamic_rotate %70 by %c15_i32_20 dim 1 : vector<8x256xf32>, i32 -> vector<8x256xf32>
    %81 = vector.extract_strided_slice %2 {offsets = [2, 0], sizes = [1, 256], strides = [1, 1]} : vector<9x256xf32> to vector<1x256xf32>
    %82 = vector.broadcast %81 : vector<1x256xf32> to vector<8x256xf32>
    %83 = arith.mulf %80, %82 : vector<8x256xf32>
    %c1_i32_21 = arith.constant 1 : i32
    %84 = tpu.dynamic_rotate %70 by %c1_i32_21 dim 1 : vector<8x256xf32>, i32 -> vector<8x256xf32>
    %85 = vector.extract_strided_slice %2 {offsets = [3, 0], sizes = [1, 256], strides = [1, 1]} : vector<9x256xf32> to vector<1x256xf32>
    %86 = vector.broadcast %85 : vector<1x256xf32> to vector<8x256xf32>
    %87 = arith.mulf %84, %86 : vector<8x256xf32>
    %c255_i32_22 = arith.constant 255 : i32
    %88 = tpu.dynamic_rotate %70 by %c255_i32_22 dim 1 : vector<8x256xf32>, i32 -> vector<8x256xf32>
    %89 = vector.extract_strided_slice %2 {offsets = [5, 0], sizes = [1, 256], strides = [1, 1]} : vector<9x256xf32> to vector<1x256xf32>
    %90 = vector.broadcast %89 : vector<1x256xf32> to vector<8x256xf32>
    %91 = arith.mulf %88, %90 : vector<8x256xf32>
    %c241_i32_23 = arith.constant 241 : i32
    %92 = tpu.dynamic_rotate %70 by %c241_i32_23 dim 1 : vector<8x256xf32>, i32 -> vector<8x256xf32>
    %93 = vector.extract_strided_slice %2 {offsets = [6, 0], sizes = [1, 256], strides = [1, 1]} : vector<9x256xf32> to vector<1x256xf32>
    %94 = vector.broadcast %93 : vector<1x256xf32> to vector<8x256xf32>
    %95 = arith.mulf %92, %94 : vector<8x256xf32>
    %c240_i32_24 = arith.constant 240 : i32
    %96 = tpu.dynamic_rotate %70 by %c240_i32_24 dim 1 : vector<8x256xf32>, i32 -> vector<8x256xf32>
    %97 = vector.extract_strided_slice %2 {offsets = [7, 0], sizes = [1, 256], strides = [1, 1]} : vector<9x256xf32> to vector<1x256xf32>
    %98 = vector.broadcast %97 : vector<1x256xf32> to vector<8x256xf32>
    %99 = arith.mulf %96, %98 : vector<8x256xf32>
    %c239_i32_25 = arith.constant 239 : i32
    %100 = tpu.dynamic_rotate %70 by %c239_i32_25 dim 1 : vector<8x256xf32>, i32 -> vector<8x256xf32>
    %101 = vector.extract_strided_slice %2 {offsets = [8, 0], sizes = [1, 256], strides = [1, 1]} : vector<9x256xf32> to vector<1x256xf32>
    %102 = vector.broadcast %101 : vector<1x256xf32> to vector<8x256xf32>
    %103 = arith.mulf %100, %102 : vector<8x256xf32>
    %104 = tpu.concatenate %75, %79, %83, %87, %70, %91, %95, %99, %103 in 0 : vector<8x256xf32>, vector<8x256xf32>, vector<8x256xf32>, vector<8x256xf32>, vector<8x256xf32>, vector<8x256xf32>, vector<8x256xf32>, vector<8x256xf32>, vector<8x256xf32> -> vector<72x256xf32>
    %105 = arith.truncf %104 : vector<72x256xf32> to vector<72x256xbf16>
    %cst_26 = arith.constant dense<0.000000e+00> : vector<8x256xf32>
    %106 = tpu.matmul %71, %105, %cst_26 {dimension_numbers = #tpu.dot_dimension_numbers<[1], [0], [0], [1], [0, 0, 1, 1], [], []>} : vector<8x72xbf16>, vector<72x256xbf16>, vector<8x256xf32> -> vector<8x256xf32>
    %107 = vector.shape_cast %106 : vector<8x256xf32> to vector<1x8x256xf32>
    %cst_27 = arith.constant dense<0.000000e+00> : vector<1xf32>
    %108 = vector.multi_reduction <add>, %107, %cst_27 [1, 2] : vector<1x8x256xf32> to vector<1xf32>
    %109 = vector.shape_cast %108 : vector<1xf32> to vector<1x1x1xf32>
    %110 = vector.extract %109[0, 0, 0] : f32 from vector<1x1x1xf32>
    %cst_28 = arith.constant 4.8828125E-4 : f32
    %111 = arith.mulf %110, %cst_28 : f32
    %112 = arith.mulf %106, %106 : vector<8x256xf32>
    %113 = vector.shape_cast %112 : vector<8x256xf32> to vector<1x8x256xf32>
    %cst_29 = arith.constant dense<0.000000e+00> : vector<1xf32>
    %114 = vector.multi_reduction <add>, %113, %cst_29 [1, 2] : vector<1x8x256xf32> to vector<1xf32>
    %115 = vector.shape_cast %114 : vector<1xf32> to vector<1x1x1xf32>
    %116 = vector.extract %115[0, 0, 0] : f32 from vector<1x1x1xf32>
    %cst_30 = arith.constant 4.8828125E-4 : f32
    %117 = arith.mulf %116, %cst_30 : f32
    %118 = arith.mulf %111, %111 : f32
    %119 = arith.subf %117, %118 : f32
    %cst_31 = arith.constant 9.99999974E-6 : f32
    %120 = arith.addf %119, %cst_31 : f32
    %121 = math.rsqrt %120 : f32
    %c0_32 = arith.constant 0 : index
    %c0_33 = arith.constant 0 : index
    %122 = vector.load %arg7[%c0_32, %c0_33] : memref<8x1xf32, #tpu.memory_space<vmem>>, vector<8x1xf32>
    %123 = vector.broadcast %121 : f32 to vector<8x1xf32>
    %124 = arith.mulf %122, %123 : vector<8x1xf32>
    %c0_34 = arith.constant 0 : index
    %c0_35 = arith.constant 0 : index
    %125 = vector.load %arg8[%c0_34, %c0_35] : memref<8x1xf32, #tpu.memory_space<vmem>>, vector<8x1xf32>
    %126 = vector.broadcast %111 : f32 to vector<8x1xf32>
    %127 = arith.mulf %126, %124 : vector<8x1xf32>
    %128 = arith.subf %125, %127 : vector<8x1xf32>
    %129 = vector.broadcast %124 : vector<8x1xf32> to vector<8x256xf32>
    %130 = arith.mulf %106, %129 : vector<8x256xf32>
    %131 = vector.broadcast %128 : vector<8x1xf32> to vector<8x256xf32>
    %132 = arith.addf %130, %131 : vector<8x256xf32>
    %c0_36 = arith.constant 0 : index
    %c0_37 = arith.constant 0 : index
    %c0_38 = arith.constant 0 : index
    %133 = vector.load %arg9[%c0_36, %c0_37, %c0_38] : memref<1x8x256xf32, #tpu.memory_space<vmem>>, vector<1x8x256xf32>
    %134 = vector.shape_cast %133 : vector<1x8x256xf32> to vector<8x256xf32>
    %135 = vector.shape_cast %132 : vector<8x256xf32> to vector<1x8x256xf32>
    tpu.vector_store %arg9[%c0_36, %c0_37, %c0_38], %135 {strides = array<i32>} : memref<1x8x256xf32, #tpu.memory_space<vmem>>, vector<1x8x256xf32>,
    return
  }
  func.func @transform_0(%arg0: i32) -> (i32, i32, i32) {
    %c0_i32 = arith.constant 0 : i32
    %c0_i32_0 = arith.constant 0 : i32
    %c0_i32_1 = arith.constant 0 : i32
    return %arg0, %c0_i32, %c0_i32_0 : i32, i32, i32
  }
  func.func @transform_1(%arg0: i32) -> (i32, i32) {
    %c0_i32 = arith.constant 0 : i32
    %c0_i32_0 = arith.constant 0 : i32
    %c0_i32_1 = arith.constant 0 : i32
    return %c0_i32, %c0_i32_0 : i32, i32
  }
  func.func @transform_2(%arg0: i32) -> (i32, i32) {
    %c0_i32 = arith.constant 0 : i32
    %c0_i32_0 = arith.constant 0 : i32
    %c0_i32_1 = arith.constant 0 : i32
    return %c0_i32, %c0_i32_0 : i32, i32
  }
  func.func @transform_3(%arg0: i32) -> (i32, i32) {
    %c0_i32 = arith.constant 0 : i32
    %c0_i32_0 = arith.constant 0 : i32
    %c0_i32_1 = arith.constant 0 : i32
    return %c0_i32, %c0_i32_0 : i32, i32
  }
  func.func @transform_4(%arg0: i32) -> (i32, i32) {
    %c0_i32 = arith.constant 0 : i32
    %c0_i32_0 = arith.constant 0 : i32
    %c0_i32_1 = arith.constant 0 : i32
    return %c0_i32, %c0_i32_0 : i32, i32
  }
  func.func @transform_5(%arg0: i32) -> (i32, i32) {
    %c0_i32 = arith.constant 0 : i32
    %c0_i32_0 = arith.constant 0 : i32
    %c0_i32_1 = arith.constant 0 : i32
    return %c0_i32, %c0_i32_0 : i32, i32
  }
  func.func @transform_6(%arg0: i32) -> (i32, i32) {
    %c0_i32 = arith.constant 0 : i32
    %c0_i32_0 = arith.constant 0 : i32
    %c0_i32_1 = arith.constant 0 : i32
    return %c0_i32, %c0_i32_0 : i32, i32
  }
  func.func @transform_7(%arg0: i32) -> (i32, i32) {
    %c0_i32 = arith.constant 0 : i32
    %c0_i32_0 = arith.constant 0 : i32
    %c0_i32_1 = arith.constant 0 : i32
    return %c0_i32, %c0_i32_0 : i32, i32
  }
  func.func @transform_8(%arg0: i32) -> (i32, i32, i32) {
    %c0_i32 = arith.constant 0 : i32
    %c0_i32_0 = arith.constant 0 : i32
    %c0_i32_1 = arith.constant 0 : i32
    return %arg0, %c0_i32, %c0_i32_0 : i32, i32, i32
  }
}

</mosaic_0001>

<llo_original>
// kernel: tpu_custom_call.1
$region0: #{tpu_custom_call.1}
  #allocation0 [shape = 'u32[]', space=smem, size = 0x4, offset = 0x4, fixed_abs, tag = 'smem constant byte address 0x4 - core index']
  #allocation1 [shape = 'u32[144,128]{1,0:T(1,128)}', space=vmem, size = 0x12000, scoped, tag = 'internal scratch']
  %s0 = inlined_call_operand.vmem [shape: f32[2,8,256], index: 0, kind: input, shape index: {}]
  %s1 = inlined_call_operand.hbm [shape: f32[9,256], index: 1, kind: input, shape index: {}]
  %s2 = inlined_call_operand.vmem [shape: bf16[8,72], index: 2, kind: input, shape index: {}]
  %s3 = inlined_call_operand.vmem [shape: f32[8,1], index: 3, kind: input, shape index: {}]
  %s4 = inlined_call_operand.vmem [shape: f32[8,1], index: 4, kind: input, shape index: {}]
  %s5 = inlined_call_operand.vmem [shape: bf16[8,72], index: 5, kind: input, shape index: {}]
  %s6 = inlined_call_operand.vmem [shape: f32[8,1], index: 6, kind: input, shape index: {}]
  %s7 = inlined_call_operand.vmem [shape: f32[8,1], index: 7, kind: input, shape index: {}]
  %s8 = inlined_call_operand.hbm [shape: f32[2,8,256], index: 8, kind: output, shape index: {}]
  %s9 = sld [smem:[#allocation0]]
  $region69: #{tpu_custom_call.1} parent=0
    _
  %s11 = ssub.s32 1, %s9
  %s12 = scalar_select 0, %s11, %s9
  $region1: #{tpu_custom_call.1} parent=0
    #allocation2 [shape = 'u8[16384]{0}', space=vmem, size = 0x4000, scoped, tag = 'input window, operand 1, single buffered']
    #allocation3 [shape = 's32[2]{0}', space=sflag, size = 0x8, scoped, tag = 'scoped memory for tpu_custom_call.1']
    #allocation4 [shape = 's32[2]{0}', space=sflag, size = 0x8, scoped, tag = 'scoped memory for tpu_custom_call.1']
    #allocation5 [shape = 'u8[16384]{0}', space=vmem, size = 0x4000, scoped, tag = 'output window, operand 0']
    %13 = vsyncpa [#allocation3], 0
    %14 = vsyncpa [#allocation4], 0
    %s15 = scalar_lea.sflag [#allocation4], 1
    %16 = vsyncpa %s15, 0
    loop: start=0, step=1, limit=4
    $region2: #{tpu_custom_call.1} parent=1 // loop_pre_header
      _
    $region3: #{tpu_custom_call.1} parent=1 // loop_header
      %s18 = sphi 0, %s22
      %p19 = scmp.ge.s32.totalorder %s18, 4
      %s28 = sphi 0, %s30
      %s31 = sphi 0, %s28
      %s32 = sphi 0, %s31
      %s48 = sphi 0, %s32
      %s52 = sphi 0, %s52
      %s54 = sphi 0, %s52
      %s55 = sphi 0, %s54
      %s69 = sphi 0, %s55
      %s73 = sphi 0, %s73
      %s75 = sphi 0, %s73
      %s76 = sphi 0, %s75
      %s90 = sphi 0, %s76
      %s94 = sphi 0, %s94
      %s96 = sphi 0, %s94
      %s97 = sphi 0, %s96
      %s111 = sphi 0, %s97
      %s115 = sphi 0, %s115
      %s117 = sphi 0, %s115
      %s118 = sphi 0, %s117
      %s132 = sphi 0, %s118
      %s136 = sphi 0, %s136
      %s138 = sphi 0, %s136
      %s139 = sphi 0, %s138
      %s153 = sphi 0, %s139
      %s157 = sphi 0, %s157
      %s159 = sphi 0, %s157
      %s160 = sphi 0, %s159
      %s174 = sphi 0, %s160
      %s178 = sphi 0, %s178
      %s180 = sphi 0, %s178
      %s181 = sphi 0, %s180
      %s195 = sphi 0, %s181
      %s201 = sphi 0, %s203
      %s204 = sphi 0, %s201
      %s205 = sphi 0, %s204
      %s221 = sphi 0, %s205
    $region4: #{tpu_custom_call.1} parent=1 // loop_header_branch
      %21 = sbr.rel (%p19) target = $region8
    $region5: #{tpu_custom_call.1} parent=1 // loop_body
      %s23 = ssub.s32 %s18, 1
      %s24 = ssub.s32 %s18, 2
      %s25 = sadd.s32 %s18, 1
      %s26 = ssub.s32 %s18, %s25
      %p27 = scmp.eq.s32.totalorder %s26, 0
      %s29 = sadd.s32 %s28, 1
      %s30 = scalar_select %p27, %s28, %s29
      %p33 = pneg %p27
      %p34 = scmp.eq.s32.totalorder %s18, 1
      %p35 = por %p33, %p34
      %p36 = scmp.ne.s32.totalorder %s28, %s31
      %p37 = scmp.eq.s32.totalorder %s18, 0
      %p38 = por %p36, %p37
      %p39 = scmp.ne.s32.totalorder %s28, %s31
      %p40 = scmp.eq.s32.totalorder %s23, 1
      %p41 = por %p39, %p40
      %p42 = scmp.ne.s32.totalorder %s31, %s32
      %p43 = scmp.eq.s32.totalorder %s23, 0
      %p44 = por %p42, %p43
      %p45 = scmp.ne.s32.totalorder %s31, %s32
      %p46 = scmp.eq.s32.totalorder %s24, 1
      %p47 = por %p45, %p46
      %p49 = scmp.ne.s32.totalorder %s32, %s48
      %p50 = scmp.eq.s32.totalorder %s24, 0
      %p51 = por %p49, %p50
      %s53 = sadd.s32 %s52, 1
      %p56 = scmp.eq.s32.totalorder %s18, 1
      %p57 = scmp.ne.s32.totalorder %s52, %s54
      %p58 = scmp.eq.s32.totalorder %s18, 0
      %p59 = por %p57, %p58
      %p60 = scmp.ne.s32.totalorder %s52, %s54
      %p61 = scmp.eq.s32.totalorder %s23, 1
      %p62 = por %p60, %p61
      %p63 = scmp.ne.s32.totalorder %s54, %s55
      %p64 = scmp.eq.s32.totalorder %s23, 0
      %p65 = por %p63, %p64
      %p66 = scmp.ne.s32.totalorder %s54, %s55
      %p67 = scmp.eq.s32.totalorder %s24, 1
      %p68 = por %p66, %p67
      %p70 = scmp.ne.s32.totalorder %s55, %s69
      %p71 = scmp.eq.s32.totalorder %s24, 0
      %p72 = por %p70, %p71
      %s74 = sadd.s32 %s73, 1
      %p77 = scmp.eq.s32.totalorder %s18, 1
      %p78 = scmp.ne.s32.totalorder %s73, %s75
      %p79 = scmp.eq.s32.totalorder %s18, 0
      %p80 = por %p78, %p79
      %p81 = scmp.ne.s32.totalorder %s73, %s75
      %p82 = scmp.eq.s32.totalorder %s23, 1
      %p83 = por %p81, %p82
      %p84 = scmp.ne.s32.totalorder %s75, %s76
      %p85 = scmp.eq.s32.totalorder %s23, 0
      %p86 = por %p84, %p85
      %p87 = scmp.ne.s32.totalorder %s75, %s76
      %p88 = scmp.eq.s32.totalorder %s24, 1
      %p89 = por %p87, %p88
      %p91 = scmp.ne.s32.totalorder %s76, %s90
      %p92 = scmp.eq.s32.totalorder %s24, 0
      %p93 = por %p91, %p92
      %s95 = sadd.s32 %s94, 1
      %p98 = scmp.eq.s32.totalorder %s18, 1
      %p99 = scmp.ne.s32.totalorder %s94, %s96
      %p100 = scmp.eq.s32.totalorder %s18, 0
      %p101 = por %p99, %p100
      %p102 = scmp.ne.s32.totalorder %s94, %s96
      %p103 = scmp.eq.s32.totalorder %s23, 1
      %p104 = por %p102, %p103
      %p105 = scmp.ne.s32.totalorder %s96, %s97
      %p106 = scmp.eq.s32.totalorder %s23, 0
      %p107 = por %p105, %p106
      %p108 = scmp.ne.s32.totalorder %s96, %s97
      %p109 = scmp.eq.s32.totalorder %s24, 1
      %p110 = por %p108, %p109
      %p112 = scmp.ne.s32.totalorder %s97, %s111
      %p113 = scmp.eq.s32.totalorder %s24, 0
      %p114 = por %p112, %p113
      %s116 = sadd.s32 %s115, 1
      %p119 = scmp.eq.s32.totalorder %s18, 1
      %p120 = scmp.ne.s32.totalorder %s115, %s117
      %p121 = scmp.eq.s32.totalorder %s18, 0
      %p122 = por %p120, %p121
      %p123 = scmp.ne.s32.totalorder %s115, %s117
      %p124 = scmp.eq.s32.totalorder %s23, 1
      %p125 = por %p123, %p124
      %p126 = scmp.ne.s32.totalorder %s117, %s118
      %p127 = scmp.eq.s32.totalorder %s23, 0
      %p128 = por %p126, %p127
      %p129 = scmp.ne.s32.totalorder %s117, %s118
      %p130 = scmp.eq.s32.totalorder %s24, 1
      %p131 = por %p129, %p130
      %p133 = scmp.ne.s32.totalorder %s118, %s132
      %p134 = scmp.eq.s32.totalorder %s24, 0
      %p135 = por %p133, %p134
      %s137 = sadd.s32 %s136, 1
      %p140 = scmp.eq.s32.totalorder %s18, 1
      %p141 = scmp.ne.s32.totalorder %s136, %s138
      %p142 = scmp.eq.s32.totalorder %s18, 0
      %p143 = por %p141, %p142
      %p144 = scmp.ne.s32.totalorder %s136, %s138
      %p145 = scmp.eq.s32.totalorder %s23, 1
      %p146 = por %p144, %p145
      %p147 = scmp.ne.s32.totalorder %s138, %s139
      %p148 = scmp.eq.s32.totalorder %s23, 0
      %p149 = por %p147, %p148
      %p150 = scmp.ne.s32.totalorder %s138, %s139
      %p151 = scmp.eq.s32.totalorder %s24, 1
      %p152 = por %p150, %p151
      %p154 = scmp.ne.s32.totalorder %s139, %s153
      %p155 = scmp.eq.s32.totalorder %s24, 0
      %p156 = por %p154, %p155
      %s158 = sadd.s32 %s157, 1
      %p161 = scmp.eq.s32.totalorder %s18, 1
      %p162 = scmp.ne.s32.totalorder %s157, %s159
      %p163 = scmp.eq.s32.totalorder %s18, 0
      %p164 = por %p162, %p163
      %p165 = scmp.ne.s32.totalorder %s157, %s159
      %p166 = scmp.eq.s32.totalorder %s23, 1
      %p167 = por %p165, %p166
      %p168 = scmp.ne.s32.totalorder %s159, %s160
      %p169 = scmp.eq.s32.totalorder %s23, 0
      %p170 = por %p168, %p169
      %p171 = scmp.ne.s32.totalorder %s159, %s160
      %p172 = scmp.eq.s32.totalorder %s24, 1
      %p173 = por %p171, %p172
      %p175 = scmp.ne.s32.totalorder %s160, %s174
      %p176 = scmp.eq.s32.totalorder %s24, 0
      %p177 = por %p175, %p176
      %s179 = sadd.s32 %s178, 1
      %p182 = scmp.eq.s32.totalorder %s18, 1
      %p183 = scmp.ne.s32.totalorder %s178, %s180
      %p184 = scmp.eq.s32.totalorder %s18, 0
      %p185 = por %p183, %p184
      %p186 = scmp.ne.s32.totalorder %s178, %s180
      %p187 = scmp.eq.s32.totalorder %s23, 1
      %p188 = por %p186, %p187
      %p189 = scmp.ne.s32.totalorder %s180, %s181
      %p190 = scmp.eq.s32.totalorder %s23, 0
      %p191 = por %p189, %p190
      %p192 = scmp.ne.s32.totalorder %s180, %s181
      %p193 = scmp.eq.s32.totalorder %s24, 1
      %p194 = por %p192, %p193
      %p196 = scmp.ne.s32.totalorder %s181, %s195
      %p197 = scmp.eq.s32.totalorder %s24, 0
      %p198 = por %p196, %p197
      %s199 = ssub.s32 %s18, %s25
      %p200 = scmp.eq.s32.totalorder %s199, 0
      %s202 = sadd.s32 %s201, 1
      %s203 = scalar_select %p200, %s201, %s202
      %p206 = pneg %p200
      %p207 = scmp.eq.s32.totalorder %s18, 1
      %p208 = por %p206, %p207
      %p209 = scmp.ne.s32.totalorder %s201, %s204
      %p210 = scmp.eq.s32.totalorder %s18, 0
      %p211 = por %p209, %p210
      %p212 = scmp.ne.s32.totalorder %s201, %s204
      %p213 = scmp.eq.s32.totalorder %s23, 1
      %p214 = por %p212, %p213
      %p215 = scmp.ne.s32.totalorder %s204, %s205
      %p216 = scmp.eq.s32.totalorder %s23, 0
      %p217 = por %p215, %p216
      %p218 = scmp.ne.s32.totalorder %s204, %s205
      %p219 = scmp.eq.s32.totalorder %s24, 1
      %p220 = por %p218, %p219
      %p222 = scmp.ne.s32.totalorder %s205, %s221
      %p223 = scmp.eq.s32.totalorder %s24, 0
      %p224 = por %p222, %p223
      %p225 = scmp.le.s32.totalorder 1, %s18
      %p226 = scmp.lt.s32.totalorder %s18, 3
      %p227 = pnand %p225, %p226
      %p228 = pneg %p227
      // Predicated region
      $region9: #{tpu_custom_call.1} parent=5 // pred_check
        _
      $region10: #{tpu_custom_call.1} parent=5 // pred_check_branch
        %230 = sbr.rel (%p227) target = $region12
      $region11: #{tpu_custom_call.1} parent=5 // pred_region
        %s231 = ssub.s32 %s18, 1
        // Predicated region
        $region13: #{tpu_custom_call.1} parent=11 // pred_check
          %p232 = pneg %p65
        $region14: #{tpu_custom_call.1} parent=11 // pred_check_branch
          %234 = sbr.rel (%p232) target = $region16
        $region15: #{tpu_custom_call.1} parent=11 // pred_region
          %s236 = ssub.s32 512, 512
          %237 = vsyncadd [#allocation3], %s236
          %s238 = sshll.u32 [#allocation2], 4
          %s239 = int_to_ptr.vmem [resolvable:$true] %s238
          %244 = dma.hbm_to_vmem [thread:$0]  %s1, 512, %s239, [#allocation3], 256, 256, 16
        $region16: #{tpu_custom_call.1} parent=11 // pred_fallthru
          _
        // Predicated region
        $region17: #{tpu_custom_call.1} parent=11 // pred_check
          %p245 = pneg %p86
        $region18: #{tpu_custom_call.1} parent=11 // pred_check_branch
          %247 = sbr.rel (%p245) target = $region20
        $region19: #{tpu_custom_call.1} parent=11 // pred_region
          _
        $region20: #{tpu_custom_call.1} parent=11 // pred_fallthru
          _
        // Predicated region
        $region21: #{tpu_custom_call.1} parent=11 // pred_check
          %p248 = pneg %p107
        $region22: #{tpu_custom_call.1} parent=11 // pred_check_branch
          %250 = sbr.rel (%p248) target = $region24
        $region23: #{tpu_custom_call.1} parent=11 // pred_region
          _
        $region24: #{tpu_custom_call.1} parent=11 // pred_fallthru
          _
        // Predicated region
        $region25: #{tpu_custom_call.1} parent=11 // pred_check
          %p251 = pneg %p128
        $region26: #{tpu_custom_call.1} parent=11 // pred_check_branch
          %253 = sbr.rel (%p251) target = $region28
        $region27: #{tpu_custom_call.1} parent=11 // pred_region
          _
        $region28: #{tpu_custom_call.1} parent=11 // pred_fallthru
          _
        // Predicated region
        $region29: #{tpu_custom_call.1} parent=11 // pred_check
          %p254 = pneg %p149
        $region30: #{tpu_custom_call.1} parent=11 // pred_check_branch
          %256 = sbr.rel (%p254) target = $region32
        $region31: #{tpu_custom_call.1} parent=11 // pred_region
          _
        $region32: #{tpu_custom_call.1} parent=11 // pred_fallthru
          _
        // Predicated region
        $region33: #{tpu_custom_call.1} parent=11 // pred_check
          %p257 = pneg %p170
        $region34: #{tpu_custom_call.1} parent=11 // pred_check_branch
          %259 = sbr.rel (%p257) target = $region36
        $region35: #{tpu_custom_call.1} parent=11 // pred_region
          _
        $region36: #{tpu_custom_call.1} parent=11 // pred_fallthru
          _
        // Predicated region
        $region37: #{tpu_custom_call.1} parent=11 // pred_check
          %p260 = pneg %p191
        $region38: #{tpu_custom_call.1} parent=11 // pred_check_branch
          %262 = sbr.rel (%p260) target = $region40
        $region39: #{tpu_custom_call.1} parent=11 // pred_region
          _
        $region40: #{tpu_custom_call.1} parent=11 // pred_fallthru
          _
      $region12: #{tpu_custom_call.1} parent=5 // pred_fallthru
        _
      %p263 = scmp.lt.s32.totalorder %s18, 2
      // Predicated region
      $region41: #{tpu_custom_call.1} parent=5 // pred_check
        %p264 = pneg %p263
      $region42: #{tpu_custom_call.1} parent=5 // pred_check_branch
        %266 = sbr.rel (%p264) target = $region44
      $region43: #{tpu_custom_call.1} parent=5 // pred_region
        // Predicated region
        $region45: #{tpu_custom_call.1} parent=43 // pred_check
          %p267 = pneg %p38
        $region46: #{tpu_custom_call.1} parent=43 // pred_check_branch
          %269 = sbr.rel (%p267) target = $region48
        $region47: #{tpu_custom_call.1} parent=43 // pred_region
          %p270 = scmp.lt.s32.totalorder %s18, 1
          %s271 = scalar_select %p270, %s18, 1
          %s272 = smul.addr %s271, 2
          %s273 = smul.addr %s272, 8
          %s274 = scalar_lea.vmem %s0, %s273
        $region48: #{tpu_custom_call.1} parent=43 // pred_fallthru
          _
      $region44: #{tpu_custom_call.1} parent=5 // pred_fallthru
        _
      %p275 = scmp.le.s32.totalorder 1, %s18
      %p276 = scmp.lt.s32.totalorder %s18, 3
      %p277 = pnand %p275, %p276
      %p278 = pneg %p277
      // Predicated region
      $region49: #{tpu_custom_call.1} parent=5 // pred_check
        _
      $region50: #{tpu_custom_call.1} parent=5 // pred_check_branch
        %280 = sbr.rel (%p277) target = $region52
      $region51: #{tpu_custom_call.1} parent=5 // pred_region
        %s281 = ssub.s32 %s18, 1
        // Predicated region
        $region53: #{tpu_custom_call.1} parent=51 // pred_check
          %p282 = pneg %p65
        $region54: #{tpu_custom_call.1} parent=51 // pred_check_branch
          %284 = sbr.rel (%p282) target = $region56
        $region55: #{tpu_custom_call.1} parent=51 // pred_region
          %285 = dma.done [#allocation3], 512
        $region56: #{tpu_custom_call.1} parent=51 // pred_fallthru
          _
        %p286 = scmp.lt.s32.totalorder %s23, 1
        %s287 = scalar_select %p286, %s23, 1
        %s288 = smul.addr %s287, 2
        %s289 = smul.addr %s288, 8
        %s290 = scalar_lea.vmem %s0, %s289
        %p291 = pneg %p44
        %p292 = pneg %p41
        %p293 = pneg %p65
        %p294 = pneg %p62
        %p295 = pneg %p86
        %p296 = pneg %p83
        %p297 = pneg %p107
        %p298 = pneg %p104
        %p299 = pneg %p128
        %p300 = pneg %p125
        %p301 = pneg %p149
        %p302 = pneg %p146
        %p303 = pneg %p170
        %p304 = pneg %p167
        %p305 = pneg %p191
        %p306 = pneg %p188
        %p307 = pneg %p217
        %p308 = pneg %p214
        %s309 = sand.u32 %s204, 1
        %s310 = scalar_lea.sflag [#allocation4], %s309
        %s311 = sand.u32 %s204, 1
        %s312 = smul.addr %s311, 16
        %s313 = scalar_lea.vmem [#allocation5], %s312
        %p314 = scmp.lt.s32.totalorder %s23, 1
        %s315 = scalar_select %p314, %s23, 1
        %s316 = smul.addr %s315, 2
        %s317 = smul.addr %s316, 8
        %s318 = scalar_lea.vmem %s0, %s317
        %v320 = vld [vmem:[%s318] sm:$0xff]
        %v321 = vld [vmem:[%s318 + $0x8] sm:$0xff]
        %v322 = vld [vmem:[#allocation2] sm:$0xff]
        %v323 = vld [vmem:[#allocation2 + $0x8] sm:$0xff]
        %v324 = vld [vmem:[#allocation2 + $0x10] sm:$0x1]
        %v325 = vld [vmem:[#allocation2 + $0x18] sm:$0x1]
        %v326 = vld [vmem:[%s2] sm:$0xf]
        %327 = vrot.lane.b32.xlu0 %v320, 17
        %v328 = vpop.permute.xlu0 %327
        %329 = vrot.lane.b32.xlu0 %v321, 17
        %v330 = vpop.permute.xlu0 %329
        %v331 = vlaneseq
        %v332 = vand.u32 %v331, 127
        %vm333 = vcmp.lt.s32.totalorder %v332, 17
        %v334 = vsel %vm333, %v328, %v330
        %v335 = vsel %vm333, %v330, %v328
        %v336 = vlaneseq
        %v337 = vshrl.u32 %v336, 7
        %v338 = vsub.s32 0, %v337
        %v339 = vrot.slane %v322, %v338
        %v340 = vlaneseq
        %v341 = vshrl.u32 %v340, 7
        %v342 = vsub.s32 0, %v341
        %v343 = vrot.slane %v323, %v342
        %v344 = vmul.f32 %v335, %v339
        %v345 = vmul.f32 %v334, %v343
        %346 = vrot.lane.b32.xlu0 %v320, 16
        %v347 = vpop.permute.xlu0 %346
        %348 = vrot.lane.b32.xlu0 %v321, 16
        %v349 = vpop.permute.xlu0 %348
        %vm350 = vcmp.lt.s32.totalorder %v332, 16
        %v351 = vsel %vm350, %v347, %v349
        %v352 = vsel %vm350, %v349, %v347
        %v353 = vlaneseq
        %v354 = vshrl.u32 %v353, 7
        %v355 = vsub.s32 1, %v354
        %v356 = vrot.slane %v322, %v355
        %v357 = vlaneseq
        %v358 = vshrl.u32 %v357, 7
        %v359 = vsub.s32 1, %v358
        %v360 = vrot.slane %v323, %v359
        %v361 = vmul.f32 %v352, %v356
        %v362 = vmul.f32 %v351, %v360
        %363 = vrot.lane.b32.xlu0 %v320, 15
        %v364 = vpop.permute.xlu0 %363
        %365 = vrot.lane.b32.xlu0 %v321, 15
        %v366 = vpop.permute.xlu0 %365
        %vm367 = vcmp.lt.s32.totalorder %v332, 15
        %v368 = vsel %vm367, %v364, %v366
        %v369 = vsel %vm367, %v366, %v364
        %v370 = vlaneseq
        %v371 = vshrl.u32 %v370, 7
        %v372 = vsub.s32 2, %v371
        %v373 = vrot.slane %v322, %v372
        %v374 = vlaneseq
        %v375 = vshrl.u32 %v374, 7
        %v376 = vsub.s32 2, %v375
        %v377 = vrot.slane %v323, %v376
        %v378 = vmul.f32 %v369, %v373
        %v379 = vmul.f32 %v368, %v377
        %380 = vrot.lane.b32.xlu0 %v320, 1
        %v381 = vpop.permute.xlu0 %380
        %382 = vrot.lane.b32.xlu0 %v321, 1
        %v383 = vpop.permute.xlu0 %382
        %vm384 = vcmp.lt.s32.totalorder %v332, 1
        %v385 = vsel %vm384, %v381, %v383
        %v386 = vsel %vm384, %v383, %v381
        %v387 = vlaneseq
        %v388 = vshrl.u32 %v387, 7
        %v389 = vsub.s32 3, %v388
        %v390 = vrot.slane %v322, %v389
        %v391 = vlaneseq
        %v392 = vshrl.u32 %v391, 7
        %v393 = vsub.s32 3, %v392
        %v394 = vrot.slane %v323, %v393
        %v395 = vmul.f32 %v386, %v390
        %v396 = vmul.f32 %v385, %v394
        %397 = vrot.lane.b32.xlu0 %v320, 127
        %v398 = vpop.permute.xlu0 %397
        %399 = vrot.lane.b32.xlu0 %v321, 127
        %v400 = vpop.permute.xlu0 %399
        %vm401 = vcmp.lt.s32.totalorder %v332, 127
        %v402 = vsel %vm401, %v398, %v400
        %v403 = vsel %vm401, %v400, %v398
        %v404 = vlaneseq
        %v405 = vshrl.u32 %v404, 7
        %v406 = vsub.s32 5, %v405
        %v407 = vrot.slane %v322, %v406
        %v408 = vlaneseq
        %v409 = vshrl.u32 %v408, 7
        %v410 = vsub.s32 5, %v409
        %v411 = vrot.slane %v323, %v410
        %v412 = vmul.f32 %v402, %v407
        %v413 = vmul.f32 %v403, %v411
        %414 = vrot.lane.b32.xlu0 %v320, 113
        %v415 = vpop.permute.xlu0 %414
        %416 = vrot.lane.b32.xlu0 %v321, 113
        %v417 = vpop.permute.xlu0 %416
        %vm418 = vcmp.lt.s32.totalorder %v332, 113
        %v419 = vsel %vm418, %v415, %v417
        %v420 = vsel %vm418, %v417, %v415
        %v421 = vlaneseq
        %v422 = vshrl.u32 %v421, 7
        %v423 = vsub.s32 6, %v422
        %v424 = vrot.slane %v322, %v423
        %v425 = vlaneseq
        %v426 = vshrl.u32 %v425, 7
        %v427 = vsub.s32 6, %v426
        %v428 = vrot.slane %v323, %v427
        %v429 = vmul.f32 %v419, %v424
        %v430 = vmul.f32 %v420, %v428
        %431 = vrot.lane.b32.xlu0 %v320, 112
        %v432 = vpop.permute.xlu0 %431
        %433 = vrot.lane.b32.xlu0 %v321, 112
        %v434 = vpop.permute.xlu0 %433
        %vm435 = vcmp.lt.s32.totalorder %v332, 112
        %v436 = vsel %vm435, %v432, %v434
        %v437 = vsel %vm435, %v434, %v432
        %v438 = vlaneseq
        %v439 = vshrl.u32 %v438, 7
        %v440 = vsub.s32 7, %v439
        %v441 = vrot.slane %v322, %v440
        %v442 = vlaneseq
        %v443 = vshrl.u32 %v442, 7
        %v444 = vsub.s32 7, %v443
        %v445 = vrot.slane %v323, %v444
        %v446 = vmul.f32 %v436, %v441
        %v447 = vmul.f32 %v437, %v445
        %448 = vrot.lane.b32.xlu0 %v320, 111
        %v449 = vpop.permute.xlu0 %448
        %450 = vrot.lane.b32.xlu0 %v321, 111
        %v451 = vpop.permute.xlu0 %450
        %vm452 = vcmp.lt.s32.totalorder %v332, 111
        %v453 = vsel %vm452, %v449, %v451
        %v454 = vsel %vm452, %v451, %v449
        %v455 = vlaneseq
        %v456 = vshrl.u32 %v455, 7
        %v457 = vsub.s32 0, %v456
        %v458 = vrot.slane %v324, %v457
        %v459 = vlaneseq
        %v460 = vshrl.u32 %v459, 7
        %v461 = vsub.s32 0, %v460
        %v462 = vrot.slane %v325, %v461
        %v463 = vmul.f32 %v453, %v458
        %v464 = vmul.f32 %v454, %v462
        %v465 = vpack.c.bf16 %v361, %v344
        %v466 = vpack.c.bf16 %v362, %v345
        %v467 = vpack.c.bf16 %v395, %v378
        %v468 = vpack.c.bf16 %v396, %v379
        %v469 = vpack.c.bf16 %v412, %v320
        %v470 = vpack.c.bf16 %v413, %v321
        %v471 = vpack.c.bf16 %v446, %v429
        %v472 = vpack.c.bf16 %v447, %v430
        %v473 = vpack.c.bf16 %v463, %v463
        %v474 = vpack.c.bf16 %v464, %v464
        %vm475 = vcmask 588800
        %v477 = vsel %vm475, %v326, 0
        %vm479 = vcmask 1043456
        %v481 = vsel %vm479, %v473, 0
        %v484 = vsel %vm479, %v474, 0
        %486 = vmatprep.subr.bf16.mxu0 0
        %487 = vmatpush1.bf16.msra.mxu0 0
        %488 = vmatprep.subr.bf16.mxu0 0
        %489 = vmatpush1.bf16.msra.mxu0 0
        %490 = vmatprep.subr.bf16.mxu0 0
        %491 = vmatpush1.bf16.msra.mxu0 0
        %492 = vmatprep.subr.bf16.mxu0 %v484
        %493 = vmatpush1.bf16.msra.mxu0 %v481
        %494 = vmatprep.subr.bf16.mxu0 %v472
        %495 = vmatpush1.bf16.msra.mxu0 %v471
        %496 = vmatprep.subr.bf16.mxu0 %v470
        %497 = vmatpush1.bf16.msra.mxu0 %v469
        %498 = vmatprep.subr.bf16.mxu0 %v468
        %499 = vmatpush1.bf16.msra.mxu0 %v467
        %500 = vmatprep.subr.bf16.mxu0 %v466
        %501 = vmatpush1.bf16.msra.mxu0 %v465
        %502 = vmatprep.subr.bf16.mxu0 0
        %503 = vmatpush2.bf16.msra.mxu0 0
        %504 = vmatprep.subr.bf16.mxu0 0
        %505 = vmatpush2.bf16.msra.mxu0 0
        %506 = vmatprep.subr.bf16.mxu0 0
        %507 = vmatpush2.bf16.msra.mxu0 0
        %508 = vmatprep.subr.bf16.mxu0 0
        %509 = vmatpush2.bf16.msra.mxu0 0
        %510 = vmatprep.subr.bf16.mxu0 0
        %511 = vmatpush2.bf16.msra.mxu0 0
        %512 = vmatprep.subr.bf16.mxu0 0
        %513 = vmatpush2.bf16.msra.mxu0 0
        %514 = vmatprep.subr.bf16.mxu0 0
        %515 = vmatpush2.bf16.msra.mxu0 0
        %516 = vmatprep.subr.bf16.mxu0 0
        %517 = vmatpush2.bf16.msra.mxu0 0
        %518 = vmatprep.mubr.bf16.mxu0 0
        %519 = vmatmul.mubr.bf16.gmra.mxu0 %v477
        %v520 = vpop.f32.mrf.mxu0
        %v521 = vadd.f32 0.0, %v520
        %v522 = vpop.f32.mrf.mxu0
        %v523 = vadd.f32 0.0, %v522
        %v524 = vpop.f32.mrf.mxu0
        %v525 = vpop.f32.mrf.mxu0
        %526 = vdwg.mxu0
        %v527 = vadd.f32 %v521, %v523
        %528 = vadd.xlane.f32.xlu0 %v527
        %v529 = vpop.xlane.xlu0 %528
        %v530 = vrot.slane %v529, 4
        %v531 = vadd.f32 %v529, %v530
        %v532 = vrot.slane %v531, 2
        %v533 = vadd.f32 %v531, %v532
        %v534 = vrot.slane %v533, 1
        %v535 = vadd.f32 %v533, %v534
        %s536 = vtos %v535
        %s537 = smul.f32 %s536, 0.00048828125
        %v538 = vmul.f32 %v521, %v521
        %v539 = vmul.f32 %v523, %v523
        %v540 = vadd.f32 %v538, %v539
        %541 = vadd.xlane.f32.xlu0 %v540
        %v542 = vpop.xlane.xlu0 %541
        %v543 = vrot.slane %v542, 4
        %v544 = vadd.f32 %v542, %v543
        %v545 = vrot.slane %v544, 2
        %v546 = vadd.f32 %v544, %v545
        %v547 = vrot.slane %v546, 1
        %v548 = vadd.f32 %v546, %v547
        %s549 = vtos %v548
        %s550 = smul.f32 %s549, 0.00048828125
        %s551 = smul.f32 %s537, %s537
        %s552 = ssub.f32 %s550, %s551
        %s553 = sadd.f32 %s552, 1e-05
        %v554 = vstv %s553
        %v555 = vrsqrt.pop %v554
        %s556 = vtos %v555
        %v557 = vld [vmem:[%s3] sm:$0xff]
        %v558 = vstv %s556
        %v559 = vmul.f32 %v557, %v558
        %v560 = vld [vmem:[%s4] sm:$0xff]
        %v561 = vstv %s537
        %v562 = vmul.f32 %v561, %v559
        %v563 = vsub.f32 %v560, %v562
        %565 = vset.pattern.permute.xlu0 0
        %566 = vperm.xlu0 %565, %v559
        %v567 = vpop.permute.xlu0 %566
        %v569 = vmul.f32 %v521, %v567
        %v570 = vmul.f32 %v523, %v567
        %572 = vset.pattern.permute.xlu0 0
        %573 = vperm.xlu0 %572, %v563
        %v574 = vpop.permute.xlu0 %573
        %v576 = vadd.f32 %v569, %v574
        %v577 = vadd.f32 %v570, %v574
        %v578 = vxor.u32 %v576, 2147483648
        %v579 = vxor.u32 %v577, 2147483648
        %v580 = vmul.f32 %v578, 1.442695
        %v581 = vpow.pop %v580
        %v582 = vmul.f32 %v579, 1.442695
        %v583 = vpow.pop %v582
        %v584 = vadd.f32 %v581, 1.0
        %v585 = vadd.f32 %v583, 1.0
        %v586 = vrcp.pop %v584
        %v587 = vmul.f32 1.0, %v586
        %v588 = vrcp.pop %v585
        %v589 = vmul.f32 1.0, %v588
        %v590 = vmul.f32 %v576, %v587
        %v591 = vmul.f32 %v577, %v589
        %v592 = vld [vmem:[%s5] sm:$0xf]
        %593 = vrot.lane.b32.xlu0 %v590, 17
        %v594 = vpop.permute.xlu0 %593
        %595 = vrot.lane.b32.xlu0 %v591, 17
        %v596 = vpop.permute.xlu0 %595
        %v597 = vsel %vm333, %v594, %v596
        %v598 = vsel %vm333, %v596, %v594
        %v599 = vmul.f32 %v598, %v339
        %v600 = vmul.f32 %v597, %v343
        %601 = vrot.lane.b32.xlu0 %v590, 16
        %v602 = vpop.permute.xlu0 %601
        %603 = vrot.lane.b32.xlu0 %v591, 16
        %v604 = vpop.permute.xlu0 %603
        %v605 = vsel %vm350, %v602, %v604
        %v606 = vsel %vm350, %v604, %v602
        %v607 = vmul.f32 %v606, %v356
        %v608 = vmul.f32 %v605, %v360
        %609 = vrot.lane.b32.xlu0 %v590, 15
        %v610 = vpop.permute.xlu0 %609
        %611 = vrot.lane.b32.xlu0 %v591, 15
        %v612 = vpop.permute.xlu0 %611
        %v613 = vsel %vm367, %v610, %v612
        %v614 = vsel %vm367, %v612, %v610
        %v615 = vmul.f32 %v614, %v373
        %v616 = vmul.f32 %v613, %v377
        %617 = vrot.lane.b32.xlu0 %v590, 1
        %v618 = vpop.permute.xlu0 %617
        %619 = vrot.lane.b32.xlu0 %v591, 1
        %v620 = vpop.permute.xlu0 %619
        %v621 = vsel %vm384, %v618, %v620
        %v622 = vsel %vm384, %v620, %v618
        %v623 = vmul.f32 %v622, %v390
        %v624 = vmul.f32 %v621, %v394
        %625 = vrot.lane.b32.xlu0 %v590, 127
        %v626 = vpop.permute.xlu0 %625
        %627 = vrot.lane.b32.xlu0 %v591, 127
        %v628 = vpop.permute.xlu0 %627
        %v629 = vsel %vm401, %v626, %v628
        %v630 = vsel %vm401, %v628, %v626
        %v631 = vmul.f32 %v629, %v407
        %v632 = vmul.f32 %v630, %v411
        %633 = vrot.lane.b32.xlu0 %v590, 113
        %v634 = vpop.permute.xlu0 %633
        %635 = vrot.lane.b32.xlu0 %v591, 113
        %v636 = vpop.permute.xlu0 %635
        %v637 = vsel %vm418, %v634, %v636
        %v638 = vsel %vm418, %v636, %v634
        %v639 = vmul.f32 %v637, %v424
        %v640 = vmul.f32 %v638, %v428
        %641 = vrot.lane.b32.xlu0 %v590, 112
        %v642 = vpop.permute.xlu0 %641
        %643 = vrot.lane.b32.xlu0 %v591, 112
        %v644 = vpop.permute.xlu0 %643
        %v645 = vsel %vm435, %v642, %v644
        %v646 = vsel %vm435, %v644, %v642
        %v647 = vmul.f32 %v645, %v441
        %v648 = vmul.f32 %v646, %v445
        %649 = vrot.lane.b32.xlu0 %v590, 111
        %v650 = vpop.permute.xlu0 %649
        %651 = vrot.lane.b32.xlu0 %v591, 111
        %v652 = vpop.permute.xlu0 %651
        %v653 = vsel %vm452, %v650, %v652
        %v654 = vsel %vm452, %v652, %v650
        %v655 = vmul.f32 %v653, %v458
        %v656 = vmul.f32 %v654, %v462
        %v657 = vpack.c.bf16 %v607, %v599
        %v658 = vpack.c.bf16 %v608, %v600
        %v659 = vpack.c.bf16 %v623, %v615
        %v660 = vpack.c.bf16 %v624, %v616
        %v661 = vpack.c.bf16 %v631, %v590
        %v662 = vpack.c.bf16 %v632, %v591
        %v663 = vpack.c.bf16 %v647, %v639
        %v664 = vpack.c.bf16 %v648, %v640
        %v665 = vpack.c.bf16 %v655, %v655
        %v666 = vpack.c.bf16 %v656, %v656
        %v668 = vsel %vm475, %v592, 0
        %v671 = vsel %vm479, %v665, 0
        %v674 = vsel %vm479, %v666, 0
        %676 = vmatprep.subr.bf16.mxu0 0
        %677 = vmatpush1.bf16.msra.mxu0 0
        %678 = vmatprep.subr.bf16.mxu0 0
        %679 = vmatpush1.bf16.msra.mxu0 0
        %680 = vmatprep.subr.bf16.mxu0 0
        %681 = vmatpush1.bf16.msra.mxu0 0
        %682 = vmatprep.subr.bf16.mxu0 %v674
        %683 = vmatpush1.bf16.msra.mxu0 %v671
        %684 = vmatprep.subr.bf16.mxu0 %v664
        %685 = vmatpush1.bf16.msra.mxu0 %v663
        %686 = vmatprep.subr.bf16.mxu0 %v662
        %687 = vmatpush1.bf16.msra.mxu0 %v661
        %688 = vmatprep.subr.bf16.mxu0 %v660
        %689 = vmatpush1.bf16.msra.mxu0 %v659
        %690 = vmatprep.subr.bf16.mxu0 %v658
        %691 = vmatpush1.bf16.msra.mxu0 %v657
        %692 = vmatprep.subr.bf16.mxu0 0
        %693 = vmatpush2.bf16.msra.mxu0 0
        %694 = vmatprep.subr.bf16.mxu0 0
        %695 = vmatpush2.bf16.msra.mxu0 0
        %696 = vmatprep.subr.bf16.mxu0 0
        %697 = vmatpush2.bf16.msra.mxu0 0
        %698 = vmatprep.subr.bf16.mxu0 0
        %699 = vmatpush2.bf16.msra.mxu0 0
        %700 = vmatprep.subr.bf16.mxu0 0
        %701 = vmatpush2.bf16.msra.mxu0 0
        %702 = vmatprep.subr.bf16.mxu0 0
        %703 = vmatpush2.bf16.msra.mxu0 0
        %704 = vmatprep.subr.bf16.mxu0 0
        %705 = vmatpush2.bf16.msra.mxu0 0
        %706 = vmatprep.subr.bf16.mxu0 0
        %707 = vmatpush2.bf16.msra.mxu0 0
        %708 = vmatprep.mubr.bf16.mxu0 0
        %709 = vmatmul.mubr.bf16.gmra.mxu0 %v668
        %v710 = vpop.f32.mrf.mxu0
        %v711 = vadd.f32 0.0, %v710
        %v712 = vpop.f32.mrf.mxu0
        %v713 = vadd.f32 0.0, %v712
        %v714 = vpop.f32.mrf.mxu0
        %v715 = vpop.f32.mrf.mxu0
        %716 = vdwg.mxu0
        %v717 = vadd.f32 %v711, %v713
        %718 = vadd.xlane.f32.xlu0 %v717
        %v719 = vpop.xlane.xlu0 %718
        %v720 = vrot.slane %v719, 4
        %v721 = vadd.f32 %v719, %v720
        %v722 = vrot.slane %v721, 2
        %v723 = vadd.f32 %v721, %v722
        %v724 = vrot.slane %v723, 1
        %v725 = vadd.f32 %v723, %v724
        %s726 = vtos %v725
        %s727 = smul.f32 %s726, 0.00048828125
        %v728 = vmul.f32 %v711, %v711
        %v729 = vmul.f32 %v713, %v713
        %v730 = vadd.f32 %v728, %v729
        %731 = vadd.xlane.f32.xlu0 %v730
        %v732 = vpop.xlane.xlu0 %731
        %v733 = vrot.slane %v732, 4
        %v734 = vadd.f32 %v732, %v733
        %v735 = vrot.slane %v734, 2
        %v736 = vadd.f32 %v734, %v735
        %v737 = vrot.slane %v736, 1
        %v738 = vadd.f32 %v736, %v737
        %s739 = vtos %v738
        %s740 = smul.f32 %s739, 0.00048828125
        %s741 = smul.f32 %s727, %s727
        %s742 = ssub.f32 %s740, %s741
        %s743 = sadd.f32 %s742, 1e-05
        %v744 = vstv %s743
        %v745 = vrsqrt.pop %v744
        %s746 = vtos %v745
        %v747 = vld [vmem:[%s6] sm:$0xff]
        %v748 = vstv %s746
        %v749 = vmul.f32 %v747, %v748
        %v750 = vld [vmem:[%s7] sm:$0xff]
        %v751 = vstv %s727
        %v752 = vmul.f32 %v751, %v749
        %v753 = vsub.f32 %v750, %v752
        %755 = vset.pattern.permute.xlu0 0
        %756 = vperm.xlu0 %755, %v749
        %v757 = vpop.permute.xlu0 %756
        %v759 = vmul.f32 %v711, %v757
        %v760 = vmul.f32 %v713, %v757
        %762 = vset.pattern.permute.xlu0 0
        %763 = vperm.xlu0 %762, %v753
        %v764 = vpop.permute.xlu0 %763
        %v766 = vadd.f32 %v759, %v764
        %v767 = vadd.f32 %v760, %v764
        %768 = vst [vmem:[%s313] sm:$0xff] %v766
        %769 = vst [vmem:[%s313 + $0x8] sm:$0xff] %v767
        %s770 = sand.u32 %s204, 1
        %s771 = scalar_lea.sflag [#allocation4], %s770
        %s772 = sand.u32 %s204, 1
        %s773 = smul.addr %s772, 16
        %s774 = scalar_lea.vmem [#allocation5], %s773
        // Predicated region
        $region57: #{tpu_custom_call.1} parent=51 // pred_check
          %p775 = pneg %p214
        $region58: #{tpu_custom_call.1} parent=51 // pred_check_branch
          %777 = sbr.rel (%p775) target = $region60
        $region59: #{tpu_custom_call.1} parent=51 // pred_region
          %s779 = ssub.s32 256, 256
          %780 = vsyncadd %s771, %s779
          %s781 = smul.addr %s23, 2
          %s782 = smul.addr %s781, 128
          %s783 = scalar_lea.hbm %s8, %s782
          %s785 = sshll.u32 %s774, 4
          %s786 = int_to_ptr.vmem [resolvable:$true] %s785
          %788 = dma.vmem_to_hbm [thread:$0]  %s786, 256, %s783, %s771
        $region60: #{tpu_custom_call.1} parent=51 // pred_fallthru
          _
      $region52: #{tpu_custom_call.1} parent=5 // pred_fallthru
        _
      %p789 = scmp.le.s32.totalorder 2, %s18
      // Predicated region
      $region61: #{tpu_custom_call.1} parent=5 // pred_check
        %p790 = pneg %p789
      $region62: #{tpu_custom_call.1} parent=5 // pred_check_branch
        %792 = sbr.rel (%p790) target = $region64
      $region63: #{tpu_custom_call.1} parent=5 // pred_region
        %s793 = ssub.s32 %s18, 2
        // Predicated region
        $region65: #{tpu_custom_call.1} parent=63 // pred_check
          %p794 = pneg %p220
        $region66: #{tpu_custom_call.1} parent=63 // pred_check_branch
          %796 = sbr.rel (%p794) target = $region68
        $region67: #{tpu_custom_call.1} parent=63 // pred_region
          %s797 = sand.u32 %s205, 1
          %s798 = scalar_lea.sflag [#allocation4], %s797
          %s799 = sand.u32 %s205, 1
          %s800 = smul.addr %s799, 16
          %s801 = scalar_lea.vmem [#allocation5], %s800
          %802 = dma.done %s798, 256
        $region68: #{tpu_custom_call.1} parent=63 // pred_fallthru
          _
      $region64: #{tpu_custom_call.1} parent=5 // pred_fallthru
        _
    $region6: #{tpu_custom_call.1} parent=1 // loop_footer
      %s22 = sadd.s32 1, %s18
    $region7: #{tpu_custom_call.1} parent=1 // loop_footer_branch
      %17 = sbr.rel target = $region3
    $region8: #{tpu_custom_call.1} parent=1 // loop_exit
      _
    %803 = vsyncpa [#allocation3], 1
    %s804 = scalar_lea.sflag [#allocation3], 1
    %805 = vsyncpa %s804, 1
    %806 = vsyncpa [#allocation4], 1
    %s807 = scalar_lea.sflag [#allocation4], 1
    %808 = vsyncpa %s807, 1

</llo_original>
